<compile_context>
chip_gen: v5e
topology: v5e:2x2
jax: 0.10.0
libtpu: 0.0.40
codegen_flags: <defaults>
</compile_context>

<pallas_src>
import jax
import jax.numpy as jnp
from jax.experimental import pallas as pl
from jax.experimental.pallas import tpu as pltpu


_VMEM = pl.BlockSpec(memory_space=pltpu.MemorySpace.VMEM)


# ----------------------------- Pallas kernels ------------------------------ #
def lstm_step_kernel(x_ref, h_ref, c_ref, wx_ref, wh_ref, b_ref,
                     h_out_ref, c_out_ref):
    """One fused LSTMCell step (PyTorch gate order: i, f, g, o).

    Weights/bias arrive with the g-gate columns pre-scaled by 2, so a single
    sigmoid pass covers all 4H lanes and tanh(g) = 2*sigmoid(2g) - 1.
    """
    H = c_ref.shape[1]
    gates = (jnp.dot(x_ref[...], wx_ref[...], preferred_element_type=jnp.float32)
             + jnp.dot(h_ref[...], wh_ref[...], preferred_element_type=jnp.float32)
             + b_ref[...])                                      # [B, 4H]

    lane = jax.lax.broadcasted_iota(jnp.int32, gates.shape, 1)
    g_mask = (lane >= 2 * H) & (lane < 3 * H)
    s = jax.nn.sigmoid(gates)                                   # ONE EUP pass
    act = jnp.where(g_mask, 2.0 * s - 1.0, s)                   # tanh on g lanes

    i_g = act[:, 0 * H:1 * H]
    f_g = act[:, 1 * H:2 * H]
    g_g = act[:, 2 * H:3 * H]
    o_g = act[:, 3 * H:4 * H]

    c_new = f_g * c_ref[...] + i_g * g_g
    h_new = o_g * jnp.tanh(c_new)

    h_out_ref[...] = h_new.astype(h_out_ref.dtype)
    c_out_ref[...] = c_new.astype(c_out_ref.dtype)


def lstm_cell_step_pallas(x, h, c, wx_k, wh_k, b_k):
    """x: [B, D_in], h/c: [B, H], wx_k: [D_in, 4H], wh_k: [H, 4H], b_k: [1, 4H]."""
    B, H = c.shape
    return pl.pallas_call(
        lstm_step_kernel,
        out_shape=(jax.ShapeDtypeStruct((B, H), jnp.float32),
                   jax.ShapeDtypeStruct((B, H), jnp.float32)),
        in_specs=[_VMEM] * 6,
        out_specs=(_VMEM, _VMEM),
        input_output_aliases={1: 0, 2: 1},   # h and c updated in place
    )(x, h, c, wx_k, wh_k, b_k)


@jax.jit
def _controller_step(in_data, prev_reads, h, c, wx_k, wh_k, b_k):
    """Single jitted dispatch: cat(in_data, *prev_reads) + fused LSTMCell kernel."""
    x = jnp.concatenate((in_data,) + tuple(prev_reads), axis=-1)
    return lstm_cell_step_pallas(x, h, c, wx_k, wh_k, b_k)


def lstm_seq_kernel(gx_ref, h0_ref, c0_ref, wh_ref,
                    hseq_ref, hlast_ref, clast_ref):
    """All T timesteps in one invocation.

    gx_ref holds the pre-computed input projection (x @ Wx + b, g columns
    already x2) for every step; only the recurrent h @ Wh matmul runs in the
    serial loop.  h/c are carried as loop values (vregs), the lane mask is
    loop-invariant, and the final state is written exactly once.
    """
    T, B, G = gx_ref.shape
    H = h0_ref.shape[1]
    wh = wh_ref[...]                                            # resident [H, 4H]

    lane = jax.lax.broadcasted_iota(jnp.int32, (B, G), 1)       # hoisted
    g_mask = (lane >= 2 * H) & (lane < 3 * H)

    def step(t, carry):
        h, c = carry
        gates = gx_ref[t] + jnp.dot(h, wh, preferred_element_type=jnp.float32)
        s = jax.nn.sigmoid(gates)                               # ONE EUP pass
        act = jnp.where(g_mask, 2.0 * s - 1.0, s)

        i_g = act[:, 0 * H:1 * H]
        f_g = act[:, 1 * H:2 * H]
        g_g = act[:, 2 * H:3 * H]
        o_g = act[:, 3 * H:4 * H]

        c_new = f_g * c + i_g * g_g
        h_new = o_g * jnp.tanh(c_new)
        hseq_ref[t] = h_new                                     # per-step output
        return h_new, c_new

    h_last, c_last = jax.lax.fori_loop(
        0, T, step, (h0_ref[...], c0_ref[...]), unroll=(T <= 16))

    hlast_ref[...] = h_last                                     # written once
    clast_ref[...] = c_last


@jax.jit
def lstm_cell_sequence_pallas(x_seq, h0, c0, wx_k, wh_k, b_k):
    """x_seq: [T, B, D_in] (in_data + prev_reads already concatenated per step)."""
    T, B, D = x_seq.shape
    H = h0.shape[1]
    # Hoisted input projection: one MXU-efficient [T*B, D] @ [D, 4H] matmul.
    gx = (x_seq.reshape(T * B, D) @ wx_k + b_k).reshape(T, B, 4 * H)
    # TODO(synk): for large T, stream gx/hseq in (TT, B, 4H) blocks over a grid
    # (inner unrolled loop per block) instead of full VMEM residency.
    return pl.pallas_call(
        lstm_seq_kernel,
        out_shape=(jax.ShapeDtypeStruct((T, B, H), jnp.float32),
                   jax.ShapeDtypeStruct((B, H), jnp.float32),
                   jax.ShapeDtypeStruct((B, H), jnp.float32)),
        in_specs=[_VMEM] * 4,
        out_specs=(_VMEM, _VMEM, _VMEM),
    )(gx, h0, c0, wh_k)


# --------------------------- Controller wrapper ---------------------------- #
class Controller:
    def __init__(self, input_size, controller_size, output_size,
                 read_data_size, key):
        self.input_size = input_size
        self.ctrl_dim = controller_size
        self.output_size = output_size
        self.read_data_size = read_data_size

        ks = jax.random.split(key, 8)
        H = controller_size
        bound = 1.0 / jnp.sqrt(H)

        # LSTMCell params (PyTorch layout: W_ih [4H, D_in], W_hh [4H, H]).
        w_ih = jax.random.uniform(ks[0], (4 * H, input_size),
                                  minval=-bound, maxval=bound, dtype=jnp.float32)
        w_hh = jax.random.uniform(ks[1], (4 * H, H),
                                  minval=-bound, maxval=bound, dtype=jnp.float32)
        b_ih = jax.random.uniform(ks[2], (4 * H,),
                                  minval=-bound, maxval=bound, dtype=jnp.float32)
        b_hh = jax.random.uniform(ks[3], (4 * H,),
                                  minval=-bound, maxval=bound, dtype=jnp.float32)

        # True (mathematical) parameters, pre-transposed for x @ W layout.
        self.wx = jnp.transpose(w_ih)                     # [D_in, 4H]
        self.wh = jnp.transpose(w_hh)                     # [H,   4H]
        self.b = (b_ih + b_hh).reshape(1, 4 * H)          # [1, 4H]

        # Kernel operands: fold a x2 into the g-gate columns so the kernels do
        # a single sigmoid pass and recover tanh via 2*sigmoid(2x)-1.
        scale = jnp.ones((4 * H,), jnp.float32).at[2 * H:3 * H].set(2.0)
        self.wx_k = self.wx * scale[None, :]
        self.wh_k = self.wh * scale[None, :]
        self.b_k = self.b * scale[None, :]
        # (At much larger H, store wx_k/wh_k as bf16 for the MXU on v6e/v7x and
        #  keep the elementwise state math in f32.)

        # h_bias_fc / c_bias_fc: Linear(1, H).  Applied to [[0.0]] so only the
        # bias matters; keep both weight and bias for fidelity.
        self.h_bias_w = jax.random.uniform(ks[4], (H, 1), minval=-1.0, maxval=1.0,
                                           dtype=jnp.float32)
        self.h_bias_b = jax.random.uniform(ks[5], (H,), minval=-1.0, maxval=1.0,
                                           dtype=jnp.float32)
        self.c_bias_w = jax.random.uniform(ks[6], (H, 1), minval=-1.0, maxval=1.0,
                                           dtype=jnp.float32)
        self.c_bias_b = jax.random.uniform(ks[7], (H,), minval=-1.0, maxval=1.0,
                                           dtype=jnp.float32)

        # TODO(synk): out_net (Linear(read_data_size, output_size) + sigmoid)
        # used by Controller.output() is not part of forward(); not kernelized.

        self.h_state = None
        self.c_state = None
        self.reset()

    def reset(self, batch_size=1):
        zero = jnp.zeros((1, 1), dtype=jnp.float32)
        h_bias = zero @ self.h_bias_w.T + self.h_bias_b[None, :]   # [1, H]
        c_bias = zero @ self.c_bias_w.T + self.c_bias_b[None, :]   # [1, H]
        self.h_state = jnp.tile(h_bias, (batch_size, 1))
        self.c_state = jnp.tile(c_bias, (batch_size, 1))

    def forward(self, in_data, prev_reads):
        """Single step; semantics match the torch forward().

        NOTE: per-step dispatch-bound — prefer forward_sequence when all step
        inputs are known ahead of time.  (Padding B to a multiple of 8
        sublanes in the caller makes 4x the batch essentially free.)
        """
        h_new, c_new = _controller_step(in_data, tuple(prev_reads),
                                        self.h_state, self.c_state,
                                        self.wx_k, self.wh_k, self.b_k)
        self.h_state, self.c_state = h_new, c_new
        return self.h_state, self.c_state

    def forward_sequence(self, x_seq):
        """Run T steps in ONE pallas_call (projected inputs + Wh + h/c resident).

        Only usable when in_data + prev_reads for every step are known up
        front (i.e. the NTM read path does not feed back into the inputs).
        x_seq: [T, B, input_size].  Returns h for every step, [T, B, H].
        """
        h_seq, h_last, c_last = lstm_cell_sequence_pallas(
            x_seq, self.h_state, self.c_state, self.wx_k, self.wh_k, self.b_k)
        self.h_state, self.c_state = h_last, c_last
        return h_seq


# ---------------------------- pure-JAX reference --------------------------- #
def lstm_cell_ref(x, h, c, wx, wh, b):
    gates = x @ wx + h @ wh + b
    H = h.shape[1]
    i_g = jax.nn.sigmoid(gates[:, :H])
    f_g = jax.nn.sigmoid(gates[:, H:2 * H])
    g_g = jnp.tanh(gates[:, 2 * H:3 * H])
    o_g = jax.nn.sigmoid(gates[:, 3 * H:])
    c_new = f_g * c + i_g * g_g
    h_new = o_g * jnp.tanh(c_new)
    return h_new, c_new


if __name__ == "__main__":
    key = jax.random.PRNGKey(0)
    k_params, k_in, k_read, k_seq = jax.random.split(key, 4)

    # Small shapes: in_data dim 8, one prev_read of dim 8 -> input_size=16,
    # controller hidden size 32, batch 2.
    batch = 2
    in_dim, read_dim = 8, 8
    input_size = in_dim + read_dim
    controller_size = 32
    output_size = 8
    read_data_size = controller_size + read_dim

    ctrl = Controller(input_size, controller_size, output_size,
                      read_data_size, k_params)

    # ---- single fused step (forward) ----
    ctrl.reset(batch_size=batch)
    in_data = jax.random.normal(k_in, (batch, in_dim), dtype=jnp.float32)
    prev_read = jax.random.normal(k_read, (batch, read_dim), dtype=jnp.float32)

    h0, c0 = ctrl.h_state, ctrl.c_state
    h, c = ctrl.forward(in_data, [prev_read])
    jax.block_until_ready((h, c))

    x_cat = jnp.concatenate([in_data, prev_read], axis=-1)
    h_ref, c_ref = lstm_cell_ref(x_cat, h0, c0, ctrl.wx, ctrl.wh, ctrl.b)
    assert h.shape == (batch, controller_size)
    assert c.shape == (batch, controller_size)
    assert jnp.allclose(h, h_ref, atol=1e-4), "h mismatch (step)"
    assert jnp.allclose(c, c_ref, atol=1e-4), "c mismatch (step)"

    # ---- fused multi-step sequence kernel (proj. inputs/weights resident) ----
    T = 6
    x_seq = jax.random.normal(k_seq, (T, batch, input_size), dtype=jnp.float32)
    ctrl.reset(batch_size=batch)
    h0, c0 = ctrl.h_state, ctrl.c_state
    h_seq = ctrl.forward_sequence(x_seq)
    jax.block_until_ready(h_seq)

    h_r, c_r = h0, c0
    hs = []
    for t in range(T):
        h_r, c_r = lstm_cell_ref(x_seq[t], h_r, c_r, ctrl.wx, ctrl.wh, ctrl.b)
        hs.append(h_r)
    h_seq_ref = jnp.stack(hs, axis=0)
    assert h_seq.shape == (T, batch, controller_size)
    assert jnp.allclose(h_seq, h_seq_ref, atol=1e-4), "h mismatch (sequence)"
    assert jnp.allclose(ctrl.h_state, h_r, atol=1e-4), "final h mismatch"
    assert jnp.allclose(ctrl.c_state, c_r, atol=1e-4), "final c mismatch"

    print("KERNEL_OK")
</pallas_src>

<mosaic_0001>
module attributes {stable_mosaic.version = 11 : i64} {
  func.func @lstm_step_kernel(%arg0: memref<2x16xf32, #tpu.memory_space<vmem>>, %arg1: memref<2x32xf32, #tpu.memory_space<vmem>>, %arg2: memref<2x32xf32, #tpu.memory_space<vmem>>, %arg3: memref<16x128xf32, #tpu.memory_space<vmem>>, %arg4: memref<32x128xf32, #tpu.memory_space<vmem>>, %arg5: memref<1x128xf32, #tpu.memory_space<vmem>>, %arg6: memref<2x32xf32, #tpu.memory_space<vmem>>, %arg7: memref<2x32xf32, #tpu.memory_space<vmem>>) attributes {dimension_semantics = [], scalar_prefetch = 0 : i64, scratch_operands = 0 : i64, tpu.core_type = #tpu.core_type<tc>} {
    %c0 = arith.constant 0 : index
    %c0_0 = arith.constant 0 : index
    %0 = vector.load %arg0[%c0, %c0_0] : memref<2x16xf32, #tpu.memory_space<vmem>>, vector<2x16xf32>
    %c0_1 = arith.constant 0 : index
    %c0_2 = arith.constant 0 : index
    %1 = vector.load %arg3[%c0_1, %c0_2] : memref<16x128xf32, #tpu.memory_space<vmem>>, vector<16x128xf32>
    %cst = arith.constant dense<0.000000e+00> : vector<2x128xf32>
    %2 = tpu.matmul %0, %1, %cst {dimension_numbers = #tpu.dot_dimension_numbers<[1], [0], [0], [1], [0, 0, 1, 1], [], []>} : vector<2x16xf32>, vector<16x128xf32>, vector<2x128xf32> -> vector<2x128xf32>
    %c0_3 = arith.constant 0 : index
    %c0_4 = arith.constant 0 : index
    %3 = vector.load %arg1[%c0_3, %c0_4] : memref<2x32xf32, #tpu.memory_space<vmem>>, vector<2x32xf32>
    %c0_5 = arith.constant 0 : index
    %c0_6 = arith.constant 0 : index
    %4 = vector.load %arg4[%c0_5, %c0_6] : memref<32x128xf32, #tpu.memory_space<vmem>>, vector<32x128xf32>
    %cst_7 = arith.constant dense<0.000000e+00> : vector<2x128xf32>
    %5 = tpu.matmul %3, %4, %cst_7 {dimension_numbers = #tpu.dot_dimension_numbers<[1], [0], [0], [1], [0, 0, 1, 1], [], []>} : vector<2x32xf32>, vector<32x128xf32>, vector<2x128xf32> -> vector<2x128xf32>
    %6 = arith.addf %2, %5 : vector<2x128xf32>
    %c0_8 = arith.constant 0 : index
    %c0_9 = arith.constant 0 : index
    %7 = vector.load %arg5[%c0_8, %c0_9] : memref<1x128xf32, #tpu.memory_space<vmem>>, vector<1x128xf32>
    %8 = vector.broadcast %7 : vector<1x128xf32> to vector<2x128xf32>
    %9 = arith.addf %6, %8 : vector<2x128xf32>
    %10 = tpu.iota {dimensions = array<i32: 1>} : vector<2x128xi32>
    %c64_i32 = arith.constant 64 : i32
    %11 = vector.broadcast %c64_i32 : i32 to vector<2x128xi32>
    %12 = arith.cmpi sge, %10, %11 : vector<2x128xi32>
    %c96_i32 = arith.constant 96 : i32
    %13 = vector.broadcast %c96_i32 : i32 to vector<2x128xi32>
    %14 = arith.cmpi slt, %10, %13 : vector<2x128xi32>
    %15 = arith.andi %12, %14 : vector<2x128xi1>
    %16 = arith.negf %9 : vector<2x128xf32>
    %17 = math.exp %16 : vector<2x128xf32>
    %cst_10 = arith.constant 1.000000e+00 : f32
    %18 = vector.broadcast %cst_10 : f32 to vector<2x128xf32>
    %19 = arith.addf %18, %17 : vector<2x128xf32>
    %20 = arith.divf %18, %19 : vector<2x128xf32>
    %cst_11 = arith.constant 2.000000e+00 : f32
    %21 = vector.broadcast %cst_11 : f32 to vector<2x128xf32>
    %22 = arith.mulf %21, %20 : vector<2x128xf32>
    %cst_12 = arith.constant 1.000000e+00 : f32
    %23 = vector.broadcast %cst_12 : f32 to vector<2x128xf32>
    %24 = arith.subf %22, %23 : vector<2x128xf32>
    %25 = arith.select %15, %24, %20 : vector<2x128xi1>, vector<2x128xf32>
    %26 = vector.extract_strided_slice %25 {offsets = [0, 0], sizes = [2, 32], strides = [1, 1]} : vector<2x128xf32> to vector<2x32xf32>
    %27 = vector.extract_strided_slice %25 {offsets = [0, 32], sizes = [2, 32], strides = [1, 1]} : vector<2x128xf32> to vector<2x32xf32>
    %28 = vector.extract_strided_slice %25 {offsets = [0, 64], sizes = [2, 32], strides = [1, 1]} : vector<2x128xf32> to vector<2x32xf32>
    %29 = vector.extract_strided_slice %25 {offsets = [0, 96], sizes = [2, 32], strides = [1, 1]} : vector<2x128xf32> to vector<2x32xf32>
    %c0_13 = arith.constant 0 : index
    %c0_14 = arith.constant 0 : index
    %30 = vector.load %arg2[%c0_13, %c0_14] : memref<2x32xf32, #tpu.memory_space<vmem>>, vector<2x32xf32>
    %31 = arith.mulf %27, %30 : vector<2x32xf32>
    %32 = arith.mulf %26, %28 : vector<2x32xf32>
    %33 = arith.addf %31, %32 : vector<2x32xf32>
    %34 = math.tanh %33 : vector<2x32xf32>
    %35 = arith.mulf %29, %34 : vector<2x32xf32>
    %c0_15 = arith.constant 0 : index
    %c0_16 = arith.constant 0 : index
    %36 = vector.load %arg6[%c0_15, %c0_16] : memref<2x32xf32, #tpu.memory_space<vmem>>, vector<2x32xf32>
    tpu.vector_store %arg6[%c0_15, %c0_16], %35 {strides = array<i32>} : memref<2x32xf32, #tpu.memory_space<vmem>>, vector<2x32xf32>,
    %c0_17 = arith.constant 0 : index
    %c0_18 = arith.constant 0 : index
    %37 = vector.load %arg7[%c0_17, %c0_18] : memref<2x32xf32, #tpu.memory_space<vmem>>, vector<2x32xf32>
    tpu.vector_store %arg7[%c0_17, %c0_18], %33 {strides = array<i32>} : memref<2x32xf32, #tpu.memory_space<vmem>>, vector<2x32xf32>,
    return
  }
}

</mosaic_0001>

<llo_original>
// kernel: _controller_step.1
$region0: #{_controller_step.1}
  #allocation0 [shape = 'u32[]', space=smem, size = 0x4, offset = 0x4, fixed_abs, tag = 'smem constant byte address 0x4 - core index']
  #allocation1 [shape = 'u32[72,128]{1,0:T(1,128)}', space=vmem, size = 0x9000, scoped, tag = 'internal scratch']
  %s0 = inlined_call_operand.vmem [shape: f32[2,16], index: 0, kind: input, shape index: {}]
  %s1 = inlined_call_operand.hbm [shape: f32[2,32], index: 1, kind: input, shape index: {}, may-alias: {1,6}]
  %s2 = inlined_call_operand.hbm [shape: f32[2,32], index: 2, kind: input, shape index: {}, may-alias: {2,7}]
  %s3 = inlined_call_operand.hbm [shape: f32[16,128], index: 3, kind: input, shape index: {}]
  %s4 = inlined_call_operand.hbm [shape: f32[32,128], index: 4, kind: input, shape index: {}]
  %s5 = inlined_call_operand.vmem [shape: f32[1,128], index: 5, kind: input, shape index: {}]
  %s6 = inlined_call_operand.hbm [shape: f32[2,32], index: 6, kind: output, shape index: {0}, may-alias: {1,6}]
  %s7 = inlined_call_operand.hbm [shape: f32[2,32], index: 7, kind: output, shape index: {1}, may-alias: {2,7}]
  %8 = xla_tuple %s6, %s7
  %s9 = sld [smem:[#allocation0]]
  $region58: #{_controller_step.1} parent=0
    _
  %s11 = ssub.s32 1, %s9
  %s12 = scalar_select 0, %s11, %s9
  $region1: #{_controller_step.1} parent=0
    #allocation2 [shape = 'u8[1024]{0}', space=vmem, size = 0x400, scoped, tag = 'input window, operand 1, single buffered']
    #allocation3 [shape = 's32[1]{0}', space=sflag, size = 0x4, scoped, tag = 'scoped memory for _controller_step.1']
    #allocation4 [shape = 's32[1]{0}', space=sflag, size = 0x4, scoped, tag = 'scoped memory for _controller_step.1']
    #allocation5 [shape = 'u8[1024]{0}', space=vmem, size = 0x400, scoped, tag = 'input window, operand 2, single buffered']
    #allocation6 [shape = 's32[1]{0}', space=sflag, size = 0x4, scoped, tag = 'scoped memory for _controller_step.1']
    #allocation7 [shape = 'u8[8192]{0}', space=vmem, size = 0x2000, scoped, tag = 'input window, operand 3, single buffered']
    #allocation8 [shape = 'u8[16384]{0}', space=vmem, size = 0x4000, scoped, tag = 'input window, operand 4, single buffered']
    #allocation9 [shape = 's32[1]{0}', space=sflag, size = 0x4, scoped, tag = 'scoped memory for _controller_step.1']
    #allocation10 [shape = 'u8[1024]{0}', space=vmem, size = 0x400, scoped, tag = 'output window, operand 0, single buffered']
    #allocation11 [shape = 'u8[1024]{0}', space=vmem, size = 0x400, scoped, tag = 'output window, operand 1, single buffered']
    #allocation12 [shape = 's32[1]{0}', space=sflag, size = 0x4, scoped, tag = 'scoped memory for _controller_step.1']
    %13 = vsyncpa [#allocation3], 0
    %14 = vsyncpa [#allocation6], 0
    %15 = vsyncpa [#allocation9], 0
    %16 = vsyncpa [#allocation4], 0
    %17 = vsyncpa [#allocation12], 0
    // Predicated region
    $region2: #{_controller_step.1} parent=1 // pred_check
      _
    $region3: #{_controller_step.1} parent=1 // pred_check_branch
      %19 = sbr.rel (0) target = $region5
    $region4: #{_controller_step.1} parent=1 // pred_region
      _
    $region5: #{_controller_step.1} parent=1 // pred_fallthru
      _
    // Predicated region
    $region6: #{_controller_step.1} parent=1 // pred_check
      _
    $region7: #{_controller_step.1} parent=1 // pred_check_branch
      %21 = sbr.rel (0) target = $region9
    $region8: #{_controller_step.1} parent=1 // pred_region
      %23 = vsyncadd [#allocation3], 0
      %s25 = sshll.u32 %s1, 4
      %s26 = int_to_ptr.hbm [resolvable:$true] %s25
      %s27 = sshll.u32 [#allocation2], 4
      %s28 = int_to_ptr.vmem [resolvable:$true] %s27
      %30 = dma.hbm_to_vmem [thread:$0]  %s26, 32, %s28, [#allocation3]
    $region9: #{_controller_step.1} parent=1 // pred_fallthru
      _
    // Predicated region
    $region10: #{_controller_step.1} parent=1 // pred_check
      _
    $region11: #{_controller_step.1} parent=1 // pred_check_branch
      %32 = sbr.rel (0) target = $region13
    $region12: #{_controller_step.1} parent=1 // pred_region
      %34 = vsyncadd [#allocation6], 0
      %s36 = sshll.u32 %s2, 4
      %s37 = int_to_ptr.hbm [resolvable:$true] %s36
      %s38 = sshll.u32 [#allocation5], 4
      %s39 = int_to_ptr.vmem [resolvable:$true] %s38
      %41 = dma.hbm_to_vmem [thread:$0]  %s37, 32, %s39, [#allocation6]
    $region13: #{_controller_step.1} parent=1 // pred_fallthru
      _
    // Predicated region
    $region14: #{_controller_step.1} parent=1 // pred_check
      _
    $region15: #{_controller_step.1} parent=1 // pred_check_branch
      %43 = sbr.rel (0) target = $region17
    $region16: #{_controller_step.1} parent=1 // pred_region
      %45 = vsyncadd [#allocation6], 0
      %s46 = sshll.u32 %s3, 4
      %s47 = int_to_ptr.hbm [resolvable:$true] %s46
      %s48 = sshll.u32 [#allocation7], 4
      %s49 = int_to_ptr.vmem [resolvable:$true] %s48
      %54 = dma.hbm_to_vmem [thread:$0]  %s47, 256, %s49, [#allocation6], 128, 128, 8
    $region17: #{_controller_step.1} parent=1 // pred_fallthru
      _
    // Predicated region
    $region18: #{_controller_step.1} parent=1 // pred_check
      _
    $region19: #{_controller_step.1} parent=1 // pred_check_branch
      %56 = sbr.rel (0) target = $region21
    $region20: #{_controller_step.1} parent=1 // pred_region
      %58 = vsyncadd [#allocation9], 0
      %s59 = sshll.u32 %s4, 4
      %s60 = int_to_ptr.hbm [resolvable:$true] %s59
      %s61 = sshll.u32 [#allocation8], 4
      %s62 = int_to_ptr.vmem [resolvable:$true] %s61
      %67 = dma.hbm_to_vmem [thread:$0]  %s60, 512, %s62, [#allocation9], 128, 128, 8
    $region21: #{_controller_step.1} parent=1 // pred_fallthru
      _
    // Predicated region
    $region22: #{_controller_step.1} parent=1 // pred_check
      _
    $region23: #{_controller_step.1} parent=1 // pred_check_branch
      %69 = sbr.rel (0) target = $region25
    $region24: #{_controller_step.1} parent=1 // pred_region
      _
    $region25: #{_controller_step.1} parent=1 // pred_fallthru
      _
    // Predicated region
    $region26: #{_controller_step.1} parent=1 // pred_check
      _
    $region27: #{_controller_step.1} parent=1 // pred_check_branch
      %71 = sbr.rel (0) target = $region29
    $region28: #{_controller_step.1} parent=1 // pred_region
      %73 = dma.done [#allocation3], 32
    $region29: #{_controller_step.1} parent=1 // pred_fallthru
      _
    // Predicated region
    $region30: #{_controller_step.1} parent=1 // pred_check
      _
    $region31: #{_controller_step.1} parent=1 // pred_check_branch
      %75 = sbr.rel (0) target = $region33
    $region32: #{_controller_step.1} parent=1 // pred_region
      %77 = dma.done [#allocation6], 32
    $region33: #{_controller_step.1} parent=1 // pred_fallthru
      _
    // Predicated region
    $region34: #{_controller_step.1} parent=1 // pred_check
      _
    $region35: #{_controller_step.1} parent=1 // pred_check_branch
      %79 = sbr.rel (0) target = $region37
    $region36: #{_controller_step.1} parent=1 // pred_region
      %81 = dma.done [#allocation6], 256
    $region37: #{_controller_step.1} parent=1 // pred_fallthru
      _
    // Predicated region
    $region38: #{_controller_step.1} parent=1 // pred_check
      _
    $region39: #{_controller_step.1} parent=1 // pred_check_branch
      %83 = sbr.rel (0) target = $region41
    $region40: #{_controller_step.1} parent=1 // pred_region
      %85 = dma.done [#allocation9], 512
    $region41: #{_controller_step.1} parent=1 // pred_fallthru
      _
    %v86 = vld [vmem:[%s0] sm:$0x3]
    %v87 = vld [vmem:[#allocation7] sm:$0xff]
    %v88 = vld [vmem:[#allocation7 + $0x8] sm:$0xff]
    %v89 = vld [vmem:[#allocation2] sm:$0x3]
    %v90 = vld [vmem:[#allocation8] sm:$0xff]
    %v91 = vld [vmem:[#allocation8 + $0x8] sm:$0xff]
    %v92 = vld [vmem:[#allocation8 + $0x10] sm:$0xff]
    %v93 = vld [vmem:[#allocation8 + $0x18] sm:$0xff]
    %vm94 = vcmask 261120
    %v96 = vsel %vm94, %v89, 0
    %98 = vmatpush.msra.mxu0 0.0
    %99 = vmatpush.msra.mxu0 0.0
    %100 = vmatpush.msra.mxu0 0.0
    %101 = vmatpush.msra.mxu0 0.0
    %102 = vmatpush.msra.mxu0 0.0
    %103 = vmatpush.msra.mxu0 0.0
    %104 = vmatpush.msra.mxu0 0.0
    %105 = vmatpush.msra.mxu0 0.0
    %106 = vmatpush.msra.mxu0 0.0
    %107 = vmatpush.msra.mxu0 0.0
    %108 = vmatpush.msra.mxu0 0.0
    %109 = vmatpush.msra.mxu0 0.0
    %110 = vmatpush.msra.mxu0 %v93
    %111 = vmatpush.msra.mxu0 %v92
    %112 = vmatpush.msra.mxu0 %v91
    %113 = vmatpush.msra.mxu0 %v90
    %114 = vmatmul.f32.gmra.mxu0 %v96
    %v115 = vpop.f32.mrf.mxu0
    %v116 = vadd.f32 0.0, %v115
    %117 = vdwg.mxu0
    %vm118 = vcmask 130048
    %v120 = vsel %vm118, %v86, 0
    %122 = vmatpush.msra.mxu0 0.0
    %123 = vmatpush.msra.mxu0 0.0
    %124 = vmatpush.msra.mxu0 0.0
    %125 = vmatpush.msra.mxu0 0.0
    %126 = vmatpush.msra.mxu0 0.0
    %127 = vmatpush.msra.mxu0 0.0
    %128 = vmatpush.msra.mxu0 0.0
    %129 = vmatpush.msra.mxu0 0.0
    %130 = vmatpush.msra.mxu0 0.0
    %131 = vmatpush.msra.mxu0 0.0
    %132 = vmatpush.msra.mxu0 0.0
    %133 = vmatpush.msra.mxu0 0.0
    %134 = vmatpush.msra.mxu0 0.0
    %135 = vmatpush.msra.mxu0 0.0
    %136 = vmatpush.msra.mxu0 %v88
    %137 = vmatpush.msra.mxu0 %v87
    %138 = vmatmul.f32.gmra.mxu0 %v120
    %v139 = vpop.f32.mrf.mxu0
    %v140 = vadd.f32 %v116, %v139
    %141 = vdwg.mxu0
    %v142 = vld [vmem:[%s5] sm:$0x1]
    %v144 = vperm.slane %v142, 0
    %v146 = vadd.f32 %v140, %v144
    %v147 = vlaneseq
    %v148 = vand.u32 %v147, 127
    %vm149 = vcmp.ge.s32.totalorder %v148, 64
    %vm150 = vcmp.lt.s32.totalorder %v148, 96
    %vm151 = vmand %vm149, %vm150
    %v152 = vxor.u32 %v146, 2147483648
    %v153 = vmul.f32 %v152, 1.442695
    %v154 = vpow.pop %v153
    %v155 = vadd.f32 %v154, 1.0
    %v156 = vrcp.pop %v155
    %v157 = vmul.f32 %v155, %v156
    %v158 = vsub.f32 1.0, %v157
    %v159 = vmul.f32 %v156, %v158
    %v160 = vadd.f32 %v156, %v159
    %vm161 = vweird.f32 %v155
    %vm162 = vweird.f32 %v156
    %vm163 = vmor %vm161, %vm162
    %v164 = vsel %vm163, %v156, %v160
    %v165 = vand.u32 2147483647, %v155
    %vm166 = vcmp.eq.f32.partialorder %v165, 8.507059e+37
    %v167 = vand.u32 %v155, 2147483648
    %v168 = vor.u32 1.1754944e-38, %v167
    %v169 = vsel %vm166, %v168, %v164
    %v170 = vmul.f32 1.0, %v169
    %v171 = vmul.f32 %v170, 2.0
    %v172 = vsub.f32 %v171, 1.0
    %v173 = vsel %vm151, %v172, %v170
    %v174 = vld [vmem:[#allocation5] sm:$0x3]
    %176 = vrot.lane.b32.xlu0 %v174, 32
    %v177 = vpop.permute.xlu0 %176
    %v179 = vmul.f32 %v173, %v177
    %181 = vrot.lane.b32.xlu0 %v173, 64
    %v182 = vpop.permute.xlu0 %181
    %v184 = vmul.f32 %v173, %v182
    %186 = vrot.lane.b32.xlu0 %v184, 32
    %v187 = vpop.permute.xlu0 %186
    %v189 = vadd.f32 %v179, %v187
    %v190 = vtanh.pop %v189
    %192 = vrot.lane.b32.xlu0 %v190, 64
    %v193 = vpop.permute.xlu0 %192
    %v195 = vmul.f32 %v173, %v193
    %197 = vrot.lane.b32.xlu0 %v195, 32
    %v198 = vpop.permute.xlu0 %197
    %vm200 = vcmask 254976
    %201 = vst.msk [vmem:[#allocation10] sm:$0x3] %vm200, %v198
    %203 = vrot.lane.b32.xlu0 %v189, 96
    %v204 = vpop.permute.xlu0 %203
    %206 = vst.msk [vmem:[#allocation11] sm:$0x3] %vm200, %v204
    // Predicated region
    $region42: #{_controller_step.1} parent=1 // pred_check
      _
    $region43: #{_controller_step.1} parent=1 // pred_check_branch
      %208 = sbr.rel (0) target = $region45
    $region44: #{_controller_step.1} parent=1 // pred_region
      %210 = vsyncadd [#allocation4], 0
      %s212 = sshll.u32 [#allocation10], 4
      %s213 = int_to_ptr.vmem [resolvable:$true] %s212
      %s214 = sshll.u32 %s6, 4
      %s215 = int_to_ptr.hbm [resolvable:$true] %s214
      %217 = dma.vmem_to_hbm [thread:$0]  %s213, 32, %s215, [#allocation4]
    $region45: #{_controller_step.1} parent=1 // pred_fallthru
      _
    // Predicated region
    $region46: #{_controller_step.1} parent=1 // pred_check
      _
    $region47: #{_controller_step.1} parent=1 // pred_check_branch
      %219 = sbr.rel (0) target = $region49
    $region48: #{_controller_step.1} parent=1 // pred_region
      %221 = vsyncadd [#allocation12], 0
      %s223 = sshll.u32 [#allocation11], 4
      %s224 = int_to_ptr.vmem [resolvable:$true] %s223
      %s225 = sshll.u32 %s7, 4
      %s226 = int_to_ptr.hbm [resolvable:$true] %s225
      %228 = dma.vmem_to_hbm [thread:$0]  %s224, 32, %s226, [#allocation12]
    $region49: #{_controller_step.1} parent=1 // pred_fallthru
      _
    // Predicated region
    $region50: #{_controller_step.1} parent=1 // pred_check
      _
    $region51: #{_controller_step.1} parent=1 // pred_check_branch
      %230 = sbr.rel (0) target = $region53
    $region52: #{_controller_step.1} parent=1 // pred_region
      %232 = dma.done [#allocation4], 32
    $region53: #{_controller_step.1} parent=1 // pred_fallthru
      _
    // Predicated region
    $region54: #{_controller_step.1} parent=1 // pred_check
      _
    $region55: #{_controller_step.1} parent=1 // pred_check_branch
      %234 = sbr.rel (0) target = $region57
    $region56: #{_controller_step.1} parent=1 // pred_region
      %236 = dma.done [#allocation12], 32
    $region57: #{_controller_step.1} parent=1 // pred_fallthru
      _
    %237 = vsyncpa [#allocation3], 1
    %238 = vsyncpa [#allocation6], 1
    %239 = vsyncpa [#allocation9], 1
    %240 = vsyncpa [#allocation4], 1
    %241 = vsyncpa [#allocation12], 1

</llo_original>
